<compile_context>
chip_gen: v7x
topology: tpu7x:2x2x1
jax: 0.10.0
libtpu: 0.0.40
codegen_flags: <defaults>
</compile_context>

<pallas_src>
import jax
import jax.numpy as jnp
from jax.experimental import pallas as pl
from jax.experimental.pallas import tpu as pltpu


# ---------------------------------------------------------------------------
# Default debug path: single HBM->HBM DMA (no VMEM roundtrip, no grid).
# ---------------------------------------------------------------------------
def _dma_copy_kernel(x_hbm_ref, o_hbm_ref):
    def body(sem):
        cp = pltpu.make_async_copy(x_hbm_ref, o_hbm_ref, sem)
        cp.start()
        cp.wait()

    pl.run_scoped(body, pltpu.SemaphoreType.DMA(()))


def identity_copy(x):
    """Identity copy of any-shaped tensor via one HBM->HBM DMA."""
    total = x.size
    itemsize = jnp.dtype(x.dtype).itemsize
    return pl.pallas_call(
        _dma_copy_kernel,
        out_shape=jax.ShapeDtypeStruct(x.shape, x.dtype),
        in_specs=[pl.BlockSpec(memory_space=pl.ANY)],
        out_specs=pl.BlockSpec(memory_space=pl.ANY),
        # Pure memory op: 0 flops, read + write of the whole tensor.
        cost_estimate=pl.CostEstimate(
            flops=0, transcendentals=0, bytes_accessed=2 * total * itemsize
        ),
    )(x)


# ---------------------------------------------------------------------------
# Optional tiled VMEM path (kept for pipelined-copy benchmarking).
# ---------------------------------------------------------------------------
def _copy_kernel(x_ref, o_ref):
    o_ref[...] = x_ref[...]


def _choose_lane_width(total):
    """Largest K in [128, 4096] (multiple of 128) dividing `total`."""
    for k in (4096, 2048, 1024, 512, 256, 128):
        if total % k == 0:
            return k
    return None


def _choose_tile_rows(rows, cols, itemsize, target_bytes=4 * 1024 * 1024):
    """Row-tile: multiple of 8, ~<=4 MiB per buffer, and >=2 grid steps.

    4 MiB/tile * 2 arrays * 2 pipeline buffers = 16 MiB; we raise the scoped
    VMEM limit explicitly to 32 MiB so this is safe on v5e/v6e/v7x.  Capping
    at rows//2 guarantees >=2 grid points so the "parallel" axis can shard
    across v7x's two TensorCores (harmless elsewhere).
    """
    if rows <= 8:
        return rows  # full extent: legal (block == full array dims)
    tr = max(8, (target_bytes // max(1, cols * itemsize)) // 8 * 8)
    half = max(8, (rows // 2) // 8 * 8)
    return min(tr, half)


def identity_copy_tiled(x, alias_output=False):
    """Identity copy through a lane-dense, row-tiled, pipelined Pallas kernel."""
    orig_shape = x.shape
    total = x.size
    itemsize = jnp.dtype(x.dtype).itemsize

    # Pad to a multiple of 8*128 elements so every size keeps lane-dense,
    # pipelined tiles (no full-extent fallback that could blow VMEM).
    flat = x.reshape(total)
    pad = (-total) % 1024
    if pad:
        flat = jnp.pad(flat, (0, pad))
    padded = total + pad

    k = _choose_lane_width(padded)  # guaranteed >= 128 after padding
    x2d = flat.reshape(padded // k, k)
    rows, cols = x2d.shape
    tile_rows = _choose_tile_rows(rows, cols, itemsize)
    grid = (pl.cdiv(rows, tile_rows),)

    y2d = pl.pallas_call(
        _copy_kernel,
        out_shape=jax.ShapeDtypeStruct((rows, cols), x.dtype),
        grid_spec=pltpu.PrefetchScalarGridSpec(
            num_scalar_prefetch=0,
            grid=grid,
            in_specs=[pl.BlockSpec((tile_rows, cols), lambda i: (i, 0))],
            out_specs=pl.BlockSpec((tile_rows, cols), lambda i: (i, 0)),
        ),
        compiler_params=pltpu.CompilerParams(
            dimension_semantics=("parallel",),
            vmem_limit_bytes=32 * 1024 * 1024,
        ),
        # Aliasing is opt-in only: a fresh output gives a clean read+write
        # bandwidth measurement and avoids the donated-buffer hazard.
        input_output_aliases=({0: 0} if alias_output else {}),
        cost_estimate=pl.CostEstimate(
            flops=0, transcendentals=0, bytes_accessed=2 * padded * itemsize
        ),
    )(x2d)

    y_flat = y2d.reshape(padded)
    if pad:
        y_flat = y_flat[:total]
    return y_flat.reshape(orig_shape)


# ---------------------------------------------------------------------------
# Module mirror
# ---------------------------------------------------------------------------
class Discriminator:
    """JAX/Pallas mirror of the (empty) PyTorch Discriminator."""

    def __init__(self, input_channels, debug_identity_kernel=False):
        # Reference __init__ registers nothing; no parameters to initialize.
        self.input_channels = input_channels
        self.debug_identity_kernel = debug_identity_kernel
        self._last_kernel_output = None

    def forward(self, x):
        # Reference forward(x) is `pass` -> returns None and does no compute.
        # The dead identity copy is elided by default; it only runs when
        # explicitly requested for debugging/testing.
        if self.debug_identity_kernel:
            self._last_kernel_output = identity_copy(x)
        return None

    __call__ = forward


if __name__ == "__main__":
    key = jax.random.PRNGKey(0)
    B, C, H, W = 2, 4, 16, 16  # small NCHW discriminator-style input
    x = jax.random.normal(key, (B, C, H, W), dtype=jnp.float32)

    # Production path: kernel fully elided, exact PyTorch semantics (None).
    disc = Discriminator(input_channels=C)
    out = disc(x)
    assert out is None
    assert disc._last_kernel_output is None  # nothing launched, nothing kept

    # Debug path: single HBM->HBM DMA identity copy.
    disc_dbg = Discriminator(input_channels=C, debug_identity_kernel=True)
    out_dbg = disc_dbg(x)
    assert out_dbg is None  # forward still returns None, like the reference
    y_dma = jax.block_until_ready(disc_dbg._last_kernel_output)
    assert y_dma.shape == (B, C, H, W)
    assert bool(jnp.all(y_dma == x))

    # Tiled VMEM path (no aliasing): verify it too, including padded odd size.
    y_tiled = jax.block_until_ready(identity_copy_tiled(x))
    assert bool(jnp.all(y_tiled == x))

    key2 = jax.random.PRNGKey(1)
    x_odd = jax.random.normal(key2, (3, 5, 7), dtype=jnp.float32)  # 105 elems
    y_odd = jax.block_until_ready(identity_copy_tiled(x_odd))
    assert y_odd.shape == x_odd.shape
    assert bool(jnp.all(y_odd == x_odd))

    print("KERNEL_OK")
</pallas_src>

<mosaic_0001>
module attributes {stable_mosaic.version = 11 : i64} {
  func.func @_dma_copy_kernel(%arg0: memref<2x4x16x16xf32, #tpu.memory_space<any>>, %arg1: memref<2x4x16x16xf32, #tpu.memory_space<any>>) attributes {dimension_semantics = [], scalar_prefetch = 0 : i64, scratch_operands = 0 : i64, tpu.core_type = #tpu.core_type<tc>} {
    "tpu.region"() ({
      %0 = tpu.sem_alloc : memref<!tpu.dma_semaphore, #tpu.memory_space<semaphore_mem>>
      tpu.enqueue_dma source(%arg0 : memref<2x4x16x16xf32, #tpu.memory_space<any>>) target(%arg1 : memref<2x4x16x16xf32, #tpu.memory_space<any>>) target_semaphore(%0 : memref<!tpu.dma_semaphore, #tpu.memory_space<semaphore_mem>>)
      tpu.wait_dma2 semaphore(%0 : memref<!tpu.dma_semaphore, #tpu.memory_space<semaphore_mem>>) src(%arg0 : memref<2x4x16x16xf32, #tpu.memory_space<any>>) dst(%arg1 : memref<2x4x16x16xf32, #tpu.memory_space<any>>)
      tpu.yield
    }) : () -> ()
    return
  }
}

</mosaic_0001>

<llo_original>
// kernel: tpu_custom_call.1
$region0: #{tpu_custom_call.1}
  #allocation0 [shape = 'u32[]', space=smem, size = 0x4, offset = 0x4, fixed_abs, tag = 'smem constant byte address 0x4 - core index']
  #allocation1 [shape = 'u32[144,128]{1,0:T(1,128)}', space=vmem, size = 0x12000, scoped, tag = 'internal scratch']
  #allocation3 [shape = 's32[]', space=sflag, size = 0x4, offset = 0, fixed_abs, tag = 'sflag constant byte address 0x0 - dummy sync flag']
  #allocation4 [shape = 'u32[0]{0}', space=smem, size = 0, offset = 0, fixed_abs, tag = 'smem constant byte address 0x0 - null']
  %s0 = inlined_call_operand.hbm [shape: f32[2,4,16,16], index: 0, kind: input, shape index: {}]
  %s1 = inlined_call_operand.hbm [shape: f32[2,4,16,16], index: 1, kind: output, shape index: {}]
  %s2 = sld [smem:[#allocation0]]
  $region3: #{tpu_custom_call.1} parent=0
    _
  %s4 = ssub.s32 1, %s2
  %s5 = scalar_select 0, %s4, %s2
  $region2: #{tpu_custom_call.1} parent=0
    #allocation2 [shape = 's32[1]{0}', space=sflag, size = 0x4, scoped, tag = 'scoped memory for tpu_custom_call.1']
    %s7 = sshll.u32 1, 14
    %s8 = sxor.u32 4294967295, %s7
    %s11 = sshll.u32 3, 24
    %s12 = sxor.u32 4294967295, %s11
    %s13 = sand.u32 0, %s12
    %s15 = sor.u32 %s13, 0
    %18 = dma.general %s0, 2048, %s1, [#allocation2], [#allocation3], [#allocation4], %s15, 0
    %s19 = smul.u32 2, 4
    %s20 = smul.u32 %s19, 16
    %s21 = smul.u32 %s20, 1
    %s22 = sshll.u32 %s21, 4
    %23 = dma.done [#allocation2], %s22

</llo_original>
